<compile_context>
chip_gen: v6e
topology: v6e:2x2x1
jax: 0.10.0
libtpu: 0.0.40
codegen_flags: <defaults>
</compile_context>

<pallas_src>
import functools

import jax
import jax.numpy as jnp
from jax import lax
from jax.experimental import pallas as pl
from jax.experimental.pallas import tpu as pltpu


def _round_up(x, m):
    return -(-x // m) * m


@functools.lru_cache(maxsize=None)
def _tpu_hw():
    """Best-effort hardware query: (physical VMEM bytes per core, TensorCores/chip)."""
    vmem = 64 << 20          # conservative default (v7x per-TC); v5e/v6e have 128 MiB
    cores = 1
    try:
        info = pltpu.get_tpu_info()
        vmem = int(getattr(info, "vmem_capacity_bytes", vmem)) or vmem
        for name in ("tensorcores_per_chip", "num_tensorcores", "tensorcore_count"):
            val = getattr(info, name, None)
            if val:
                cores = max(1, min(2, int(val)))
                break
    except Exception:
        pass
    if cores == 1:
        try:
            kind = jax.devices()[0].device_kind.lower()
            if "v7" in kind:          # v7x: 2 TensorCores per chip
                cores = 2
        except Exception:
            pass
    return vmem, cores


def _weight_and_sum_kernel(feats_ref, w_ref, b_ref, seg_ref, out_ref, *,
                           total_nodes, node_tile, tiles_per_split,
                           needs_mask, mxu_dtype):
    c = pl.program_id(0)          # TensorCore split (core-parallel axis, size 1 or 2)
    i = pl.program_id(1)          # node-tile index within the split (reduction axis)

    @pl.when(i == 0)
    def _():
        out_ref[...] = jnp.zeros_like(out_ref)

    x = feats_ref[...]                                       # (tn, F), native dtype
    tn = x.shape[0]
    num_graphs = out_ref.shape[0]

    # Per-node gate logits on the (otherwise nearly idle) MXU: (tn, F) @ (F, 1).
    w = w_ref[...].astype(x.dtype)                           # (F, 1)
    logits = jnp.dot(x, w, preferred_element_type=jnp.float32)   # (tn, 1) f32
    gate = jax.nn.sigmoid(logits + b_ref[0, 0])              # (tn, 1) f32

    wh = x * gate.astype(x.dtype)                            # (tn, F), feats dtype

    if needs_mask:
        # Only emitted when the last tile is partial or the core split wraps.
        # Zero the whole row (not just the gate): the padded tail reads undefined
        # HBM data which may be NaN/Inf and 0 * NaN would still poison the matmul.
        tile_idx = c * tiles_per_split + i
        row = lax.broadcasted_iota(jnp.int32, (tn, 1), 0) + tile_idx * node_tile
        wh = jnp.where(row < total_nodes, wh, 0.0)

    wh = wh.astype(mxu_dtype)                                # bf16 MXU feed (default)

    # One-hot segment matrix in canonical MXU orientation: (B, tn).  0/1 is exact
    # in bf16; garbage seg ids in the masked tail are harmless (their rows are 0).
    seg = seg_ref[...]                                       # (1, tn) int32
    graph_iota = lax.broadcasted_iota(jnp.int32, (num_graphs, tn), 0)
    onehot = (graph_iota == seg).astype(mxu_dtype)           # (B, tn)

    # out[b, f] += sum_n onehot[b, n] * wh[n, f], accumulated in f32.
    out_ref[...] += jnp.dot(onehot, wh, preferred_element_type=jnp.float32)


@functools.partial(
    jax.jit, static_argnames=("num_graphs", "node_tile", "num_splits", "mxu_dtype"))
def weight_and_sum(feats, lin_w, lin_b, seg_ids, *, num_graphs,
                   node_tile=None, num_splits=None, mxu_dtype=jnp.bfloat16):
    """feats: (N, F), lin_w: (F, 1), lin_b: (1, 1), seg_ids: (N,) int32 -> (B, F)."""
    n, f = feats.shape
    vmem_phys, cores = _tpu_hw()

    f_pad = max(_round_up(f, 128), 128)                 # lane-padded feature width
    in_bytes = jnp.dtype(feats.dtype).itemsize
    mxu_bytes = jnp.dtype(mxu_dtype).itemsize
    b_pad = _round_up(num_graphs, 8)

    # Per-node-row VMEM footprint (all minor dims padded to 128 lanes).
    bytes_per_row = (
        2 * f_pad * in_bytes            # double-buffered feats block
        + f_pad * in_bytes              # gate*feats product temp (feats dtype)
        + f_pad * mxu_bytes             # product cast to MXU feed dtype
        + 2 * 8 * 4                     # double-buffered (1, tile) seg-id block
        + b_pad * (4 + mxu_bytes))      # graph iota (int32) + one-hot columns
    fixed_bytes = (
        2 * b_pad * f_pad * 4           # resident f32 output block + matmul result
        + 2 * f_pad * 4                 # linear weight / bias blocks
        + (4 << 20))                    # Mosaic internal scratch slack

    usable = (vmem_phys * 3) // 4       # leave ~25% headroom below physical VMEM
    cap_rows = max(128, ((usable - fixed_bytes) // bytes_per_row) // 128 * 128)

    if node_tile is None:
        # 8-16 MiB of (padded) feats per buffer: amortizes the ~0.35us/step pipeline
        # overhead on the HBM-bound stream without risking v7x's 64 MiB VMEM.
        target_bytes = min(16 << 20, vmem_phys // 8)
        node_tile = max(128, (target_bytes // (f_pad * in_bytes)) // 128 * 128)
    node_tile = max(128, (int(node_tile) // 128) * 128)
    node_tile = min(node_tile, cap_rows, _round_up(n, 128))

    num_tiles = -(-n // node_tile)                      # cdiv
    if num_splits is None:
        num_splits = 2 if (cores >= 2 and num_tiles >= 2) else 1
    num_splits = max(1, min(int(num_splits), num_tiles))
    tiles_per_split = -(-num_tiles // num_splits)
    needs_mask = (n % node_tile != 0) or (num_splits * tiles_per_split != num_tiles)

    # Block-index map along the node axis. With an uneven split, surplus (c, i)
    # steps wrap to an in-range block; their rows are zeroed by the in-kernel mask.
    if num_splits * tiles_per_split == num_tiles:
        def tile_map(c, i):
            return c * tiles_per_split + i
    else:
        def tile_map(c, i):
            return (c * tiles_per_split + i) % num_tiles

    w_col = lin_w.reshape(f, 1).astype(jnp.float32)     # (F, 1) for the MXU logits
    bias = lin_b.reshape(1, 1).astype(jnp.float32)
    seg_row = seg_ids.reshape(1, n).astype(jnp.int32)   # (1, N): lane-major ids

    kernel = functools.partial(
        _weight_and_sum_kernel,
        total_nodes=n, node_tile=node_tile, tiles_per_split=tiles_per_split,
        needs_mask=needs_mask, mxu_dtype=mxu_dtype)

    vmem_limit = int(min(
        max(vmem_phys - (4 << 20), 32 << 20),
        max(32 << 20, fixed_bytes + node_tile * bytes_per_row + (8 << 20))))

    if num_splits > 1:
        # Explicit cross-TensorCore sharding of the node stream (v7x).
        split_sem = getattr(pltpu, "CORE_PARALLEL", pltpu.PARALLEL)
    else:
        split_sem = pltpu.ARBITRARY
    # TODO(synk): if an xprof trace on v7x still shows DMA gaps between tiles, bump
    # the feats BlockSpec to pipeline_mode=pl.Buffered(3) (budget permitting).

    partial_out = pl.pallas_call(
        kernel,
        out_shape=jax.ShapeDtypeStruct((num_splits, num_graphs, f), jnp.float32),
        grid_spec=pltpu.PrefetchScalarGridSpec(
            num_scalar_prefetch=0,
            grid=(num_splits, tiles_per_split),
            in_specs=[
                pl.BlockSpec((node_tile, f), lambda c, i: (tile_map(c, i), 0)),
                pl.BlockSpec((f, 1), lambda c, i: (0, 0)),          # linear weight col
                pl.BlockSpec((1, 1), lambda c, i: (0, 0)),          # linear bias
                pl.BlockSpec((1, node_tile), lambda c, i: (0, tile_map(c, i))),
            ],
            out_specs=pl.BlockSpec((None, num_graphs, f), lambda c, i: (c, 0, 0)),
        ),
        compiler_params=pltpu.CompilerParams(
            dimension_semantics=(split_sem, pltpu.ARBITRARY),
            vmem_limit_bytes=vmem_limit,
        ),
    )(feats, w_col, bias, seg_row)

    out = partial_out[0] if num_splits == 1 else partial_out.sum(axis=0)
    return out.astype(feats.dtype)


def weight_and_sum_ref(feats, lin_w, lin_b, seg_ids, num_graphs):
    """Pure-JAX reference (elementwise f32 gate, exact f32 segment sum)."""
    logits = jnp.sum(feats * lin_w.reshape(1, -1), axis=-1, keepdims=True)
    gate = jax.nn.sigmoid(logits + lin_b[0, 0])                  # (N, 1)
    return jax.ops.segment_sum(gate * feats, seg_ids, num_segments=num_graphs)


if __name__ == "__main__":
    key = jax.random.PRNGKey(0)
    k_feat, k_w, k_b, k_feat2 = jax.random.split(key, 4)

    in_feats = 32
    # nn.Linear(in_feats, 1): weight (1, in_feats) stored transposed as (in_feats, 1).
    lin_w = (jax.random.normal(k_w, (in_feats, 1), dtype=jnp.float32)
             / jnp.sqrt(in_feats))
    lin_b = jax.random.normal(k_b, (1, 1), dtype=jnp.float32) * 0.1

    # --- Case 1: batch of 2 "graphs": 7 + 9 = 16 nodes (DGL example scale).
    num_graphs = 2
    nodes_per_graph = [7, 9]
    n_total = sum(nodes_per_graph)
    feats = jax.random.normal(k_feat, (n_total, in_feats), dtype=jnp.float32)
    seg_ids = jnp.concatenate([
        jnp.full((c,), g, dtype=jnp.int32) for g, c in enumerate(nodes_per_graph)])

    ref = weight_and_sum_ref(feats, lin_w, lin_b, seg_ids, num_graphs)

    out_f32 = weight_and_sum(feats, lin_w, lin_b, seg_ids, num_graphs=num_graphs,
                             mxu_dtype=jnp.float32)
    out_f32 = jax.block_until_ready(out_f32)
    assert out_f32.shape == (num_graphs, in_feats)
    assert jnp.allclose(out_f32, ref, atol=2e-3, rtol=2e-3), (out_f32, ref)

    out_bf16 = weight_and_sum(feats, lin_w, lin_b, seg_ids, num_graphs=num_graphs)
    out_bf16 = jax.block_until_ready(out_bf16)
    assert jnp.allclose(out_bf16, ref, atol=3e-2, rtol=3e-2), (out_bf16, ref)

    # --- Case 2: multi-tile path with a small explicit tile (exercises the tail
    #     mask and, on multi-core chips, the 2-way node-stream split with wrap).
    num_graphs2 = 3
    nodes_per_graph2 = [100, 120, 80]
    n_total2 = sum(nodes_per_graph2)
    feats2 = jax.random.normal(k_feat2, (n_total2, in_feats), dtype=jnp.float32)
    seg_ids2 = jnp.concatenate([
        jnp.full((c,), g, dtype=jnp.int32) for g, c in enumerate(nodes_per_graph2)])

    ref2 = weight_and_sum_ref(feats2, lin_w, lin_b, seg_ids2, num_graphs2)

    out2_f32 = weight_and_sum(feats2, lin_w, lin_b, seg_ids2,
                              num_graphs=num_graphs2, node_tile=128,
                              mxu_dtype=jnp.float32)
    out2_f32 = jax.block_until_ready(out2_f32)
    assert out2_f32.shape == (num_graphs2, in_feats)
    assert jnp.allclose(out2_f32, ref2, atol=2e-3, rtol=2e-3), (out2_f32, ref2)

    out2_bf16 = weight_and_sum(feats2, lin_w, lin_b, seg_ids2,
                               num_graphs=num_graphs2, node_tile=128)
    out2_bf16 = jax.block_until_ready(out2_bf16)
    assert jnp.allclose(out2_bf16, ref2, atol=1e-1, rtol=5e-2), (out2_bf16, ref2)

    print("KERNEL_OK")
</pallas_src>

<mosaic_0001>
module attributes {stable_mosaic.version = 11 : i64} {
  func.func @_weight_and_sum_kernel(%arg0: i32, %arg1: i32, %arg2: memref<128x32xf32, #tpu.memory_space<vmem>>, %arg3: memref<32x1xf32, #tpu.memory_space<vmem>>, %arg4: memref<1x1xf32, #tpu.memory_space<vmem>>, %arg5: memref<1x128xi32, #tpu.memory_space<vmem>>, %arg6: memref<1x2x32xf32, #tpu.memory_space<vmem>>) attributes {dimension_semantics = [#tpu.dimension_semantics<arbitrary>, #tpu.dimension_semantics<arbitrary>], iteration_bounds = array<i64: 1, 1>, scalar_prefetch = 0 : i64, scratch_operands = 0 : i64, tpu.core_type = #tpu.core_type<tc>, window_params = [{transform_indices = @transform_0, window_bounds = array<i64: 128, 32>}, {pipeline_mode = #tpu.pipeline_mode<synchronous>, transform_indices = @transform_1, window_bounds = array<i64: 32, 1>}, {pipeline_mode = #tpu.pipeline_mode<synchronous>, transform_indices = @transform_2, window_bounds = array<i64: 1, 1>}, {transform_indices = @transform_3, window_bounds = array<i64: 1, 128>}, {transform_indices = @transform_4, window_bounds = array<i64: 1, 2, 32>}]} {
    %c0_i32 = arith.constant 0 : i32
    %0 = arith.cmpi eq, %arg1, %c0_i32 : i32
    %1 = arith.extui %0 : i1 to i32
    %c0_i32_0 = arith.constant 0 : i32
    %2 = arith.cmpi ne, %1, %c0_i32_0 : i32
    scf.if %2 {
      %cst_17 = arith.constant 0.000000e+00 : f32
      %42 = vector.broadcast %cst_17 : f32 to vector<2x32xf32>
      %c0_18 = arith.constant 0 : index
      %c0_19 = arith.constant 0 : index
      %c0_20 = arith.constant 0 : index
      %43 = vector.load %arg6[%c0_18, %c0_19, %c0_20] : memref<1x2x32xf32, #tpu.memory_space<vmem>>, vector<1x2x32xf32>
      %44 = vector.shape_cast %43 : vector<1x2x32xf32> to vector<2x32xf32>
      %45 = vector.shape_cast %42 : vector<2x32xf32> to vector<1x2x32xf32>
      tpu.vector_store %arg6[%c0_18, %c0_19, %c0_20], %45 {strides = array<i32>} : memref<1x2x32xf32, #tpu.memory_space<vmem>>, vector<1x2x32xf32>,
    } else {
    }
    %c0 = arith.constant 0 : index
    %c0_1 = arith.constant 0 : index
    %3 = vector.load %arg2[%c0, %c0_1] : memref<128x32xf32, #tpu.memory_space<vmem>>, vector<128x32xf32>
    %c0_2 = arith.constant 0 : index
    %c0_3 = arith.constant 0 : index
    %4 = vector.load %arg3[%c0_2, %c0_3] : memref<32x1xf32, #tpu.memory_space<vmem>>, vector<32x1xf32>
    %cst = arith.constant dense<0.000000e+00> : vector<128x1xf32>
    %5 = tpu.matmul %3, %4, %cst {dimension_numbers = #tpu.dot_dimension_numbers<[1], [0], [0], [1], [0, 0, 1, 1], [], []>} : vector<128x32xf32>, vector<32x1xf32>, vector<128x1xf32> -> vector<128x1xf32>
    %c0_4 = arith.constant 0 : index
    %c0_5 = arith.constant 0 : index
    %6 = vector.load %arg4[%c0_4, %c0_5] : memref<1x1xf32, #tpu.memory_space<vmem>>, vector<1x1xf32>
    %7 = vector.extract %6[0, 0] : f32 from vector<1x1xf32>
    %8 = vector.broadcast %7 : f32 to vector<128x1xf32>
    %9 = arith.addf %5, %8 : vector<128x1xf32>
    %10 = arith.negf %9 : vector<128x1xf32>
    %11 = math.exp %10 : vector<128x1xf32>
    %cst_6 = arith.constant 1.000000e+00 : f32
    %12 = vector.broadcast %cst_6 : f32 to vector<128x1xf32>
    %13 = arith.addf %12, %11 : vector<128x1xf32>
    %14 = arith.divf %12, %13 : vector<128x1xf32>
    %15 = vector.broadcast %14 : vector<128x1xf32> to vector<128x32xf32>
    %16 = arith.mulf %3, %15 : vector<128x32xf32>
    %c1_i32 = arith.constant 1 : i32
    %17 = arith.muli %arg0, %c1_i32 : i32
    %18 = arith.addi %17, %arg1 : i32
    %19 = tpu.iota {dimensions = array<i32: 0>} : vector<128x1xi32>
    %c128_i32 = arith.constant 128 : i32
    %20 = arith.muli %18, %c128_i32 : i32
    %21 = vector.broadcast %20 : i32 to vector<128x1xi32>
    %22 = arith.addi %19, %21 : vector<128x1xi32>
    %c16_i32 = arith.constant 16 : i32
    %23 = vector.broadcast %c16_i32 : i32 to vector<128x1xi32>
    %24 = arith.cmpi slt, %22, %23 : vector<128x1xi32>
    %cst_7 = arith.constant 0.000000e+00 : f32
    %25 = vector.shape_cast %24 : vector<128x1xi1> to vector<128x1xi1>
    %26 = vector.broadcast %25 : vector<128x1xi1> to vector<128x32xi1>
    %27 = vector.broadcast %cst_7 : f32 to vector<128x32xf32>
    %28 = arith.select %26, %16, %27 : vector<128x32xi1>, vector<128x32xf32>
    %c0_8 = arith.constant 0 : index
    %c0_9 = arith.constant 0 : index
    %29 = vector.load %arg5[%c0_8, %c0_9] : memref<1x128xi32, #tpu.memory_space<vmem>>, vector<1x128xi32>
    %30 = tpu.iota {dimensions = array<i32: 0>} : vector<2x128xi32>
    %31 = vector.broadcast %29 : vector<1x128xi32> to vector<2x128xi32>
    %32 = arith.cmpi eq, %30, %31 : vector<2x128xi32>
    %33 = arith.extui %32 : vector<2x128xi1> to vector<2x128xi32>
    %34 = arith.sitofp %33 : vector<2x128xi32> to vector<2x128xf32>
    %c0_10 = arith.constant 0 : index
    %c0_11 = arith.constant 0 : index
    %c0_12 = arith.constant 0 : index
    %35 = vector.load %arg6[%c0_10, %c0_11, %c0_12] : memref<1x2x32xf32, #tpu.memory_space<vmem>>, vector<1x2x32xf32>
    %36 = vector.shape_cast %35 : vector<1x2x32xf32> to vector<2x32xf32>
    %cst_13 = arith.constant dense<0.000000e+00> : vector<2x32xf32>
    %37 = tpu.matmul %34, %28, %cst_13 {dimension_numbers = #tpu.dot_dimension_numbers<[1], [0], [0], [1], [0, 0, 1, 1], [], []>} : vector<2x128xf32>, vector<128x32xf32>, vector<2x32xf32> -> vector<2x32xf32>
    %38 = arith.addf %36, %37 : vector<2x32xf32>
    %c0_14 = arith.constant 0 : index
    %c0_15 = arith.constant 0 : index
    %c0_16 = arith.constant 0 : index
    %39 = vector.load %arg6[%c0_14, %c0_15, %c0_16] : memref<1x2x32xf32, #tpu.memory_space<vmem>>, vector<1x2x32xf32>
    %40 = vector.shape_cast %39 : vector<1x2x32xf32> to vector<2x32xf32>
    %41 = vector.shape_cast %38 : vector<2x32xf32> to vector<1x2x32xf32>
    tpu.vector_store %arg6[%c0_14, %c0_15, %c0_16], %41 {strides = array<i32>} : memref<1x2x32xf32, #tpu.memory_space<vmem>>, vector<1x2x32xf32>,
    return
  }
  func.func @transform_0(%arg0: i32, %arg1: i32) -> (i32, i32) {
    %c1_i32 = arith.constant 1 : i32
    %0 = arith.muli %arg0, %c1_i32 : i32
    %1 = arith.addi %0, %arg1 : i32
    %c0_i32 = arith.constant 0 : i32
    %c0_i32_0 = arith.constant 0 : i32
    return %1, %c0_i32 : i32, i32
  }
  func.func @transform_1(%arg0: i32, %arg1: i32) -> (i32, i32) {
    %c0_i32 = arith.constant 0 : i32
    %c0_i32_0 = arith.constant 0 : i32
    %c0_i32_1 = arith.constant 0 : i32
    return %c0_i32, %c0_i32_0 : i32, i32
  }
  func.func @transform_2(%arg0: i32, %arg1: i32) -> (i32, i32) {
    %c0_i32 = arith.constant 0 : i32
    %c0_i32_0 = arith.constant 0 : i32
    %c0_i32_1 = arith.constant 0 : i32
    return %c0_i32, %c0_i32_0 : i32, i32
  }
  func.func @transform_3(%arg0: i32, %arg1: i32) -> (i32, i32) {
    %c1_i32 = arith.constant 1 : i32
    %0 = arith.muli %arg0, %c1_i32 : i32
    %1 = arith.addi %0, %arg1 : i32
    %c0_i32 = arith.constant 0 : i32
    %c0_i32_0 = arith.constant 0 : i32
    return %c0_i32, %1 : i32, i32
  }
  func.func @transform_4(%arg0: i32, %arg1: i32) -> (i32, i32, i32) {
    %c0_i32 = arith.constant 0 : i32
    %c0_i32_0 = arith.constant 0 : i32
    %c0_i32_1 = arith.constant 0 : i32
    return %arg0, %c0_i32, %c0_i32_0 : i32, i32, i32
  }
}

</mosaic_0001>

<llo_original>
// kernel: weight_and_sum.1
$region0: #{weight_and_sum.1}
  #allocation0 [shape = 'u32[]', space=smem, size = 0x4, offset = 0x4, fixed_abs, tag = 'smem constant byte address 0x4 - core index']
  #allocation1 [shape = 'u32[144,128]{1,0:T(1,128)}', space=vmem, size = 0x12000, scoped, tag = 'internal scratch']
  #allocation2 [shape = 'f32[1,1]{1,0:T(1,128)S(1)}', space=vmem, size = 0x200, scoped, tag = 'scoped memory for weight_and_sum.1']
  %s0 = inlined_call_operand.vmem [shape: f32[16,32], index: 0, kind: input, shape index: {}]
  %s1 = inlined_call_operand.vmem [shape: f32[32,1], index: 1, kind: input, shape index: {}]
  %s2 = inlined_call_operand.<no memory space> [shape: f32[1,1], index: 2, kind: input, shape index: {}]
  %s3 = inlined_call_operand.vmem [shape: s32[1,16], index: 3, kind: input, shape index: {}]
  %s4 = inlined_call_operand.hbm [shape: f32[1,2,32], index: 4, kind: output, shape index: {}]
  %s5 = sld [smem:[#allocation0]]
  $region30: #{weight_and_sum.1} parent=0
    _
  %s7 = ssub.s32 1, %s5
  %s8 = scalar_select 0, %s7, %s5
  %v9 = vstv %s2
  %10 = vst [vmem:[#allocation2] sm:$0x1] %v9
  $region1: #{weight_and_sum.1} parent=0
    #allocation3 [shape = 'u8[1024]{0}', space=vmem, size = 0x400, scoped, tag = 'output window, operand 0, single buffered']
    #allocation4 [shape = 's32[1]{0}', space=sflag, size = 0x4, scoped, tag = 'scoped memory for weight_and_sum.1']
    %11 = vsyncpa [#allocation4], 0
    // Predicated region
    $region2: #{weight_and_sum.1} parent=1 // pred_check
      _
    $region3: #{weight_and_sum.1} parent=1 // pred_check_branch
      %13 = sbr.rel (0) target = $region5
    $region4: #{weight_and_sum.1} parent=1 // pred_region
      %s14 = sadd.s32 0, 0
      %s15 = smul.u32 16, %s14
      %s16 = ssub.s32 2, %s15
      %s17 = smul.u32 128, %s16
      %p18 = scmp.lt.s32.totalorder %s15, 1
      %s19 = scalar_select %p18, %s15, 1
      %s20 = smul.addr %s19, 8
      %s21 = scalar_lea.vmem %s0, %s20
      %s22 = sadd.s32 0, 0
      %s23 = smul.u32 16, %s22
      %s24 = ssub.s32 2, %s23
      %s25 = smul.u32 128, %s24
    $region5: #{weight_and_sum.1} parent=1 // pred_fallthru
      _
    // Predicated region
    $region6: #{weight_and_sum.1} parent=1 // pred_check
      _
    $region7: #{weight_and_sum.1} parent=1 // pred_check_branch
      %27 = sbr.rel (0) target = $region9
    $region8: #{weight_and_sum.1} parent=1 // pred_region
      _
    $region9: #{weight_and_sum.1} parent=1 // pred_fallthru
      _
    // Predicated region
    $region10: #{weight_and_sum.1} parent=1 // pred_check
      _
    $region11: #{weight_and_sum.1} parent=1 // pred_check_branch
      %29 = sbr.rel (0) target = $region13
    $region12: #{weight_and_sum.1} parent=1 // pred_region
      _
    $region13: #{weight_and_sum.1} parent=1 // pred_fallthru
      _
    // Predicated region
    $region14: #{weight_and_sum.1} parent=1 // pred_check
      _
    $region15: #{weight_and_sum.1} parent=1 // pred_check_branch
      %31 = sbr.rel (0) target = $region17
    $region16: #{weight_and_sum.1} parent=1 // pred_region
      %s32 = sadd.s32 0, 0
      %p33 = scmp.lt.s32.totalorder %s32, 0
      %s34 = scalar_select %p33, %s32, 0
      %s35 = scalar_lea.vmem %s3, %s34
      %s36 = sadd.s32 0, 0
    $region17: #{weight_and_sum.1} parent=1 // pred_fallthru
      _
    %s37 = sadd.s32 0, 0
    %s38 = smul.u32 16, %s37
    %s39 = ssub.s32 2, %s38
    %s40 = smul.u32 128, %s39
    %p41 = scmp.lt.s32.totalorder %s38, 1
    %s42 = scalar_select %p41, %s38, 1
    %s43 = smul.addr %s42, 8
    %s44 = scalar_lea.vmem %s0, %s43
    %s45 = sadd.s32 0, 0
    %p46 = scmp.lt.s32.totalorder %s45, 0
    %s47 = scalar_select %p46, %s45, 0
    %s48 = scalar_lea.vmem %s3, %s47
    %s49 = sadd.s32 0, 0
    %s50 = smul.u32 16, %s49
    %s51 = ssub.s32 2, %s50
    %s52 = smul.u32 128, %s51
    %p53 = scmp.lt.s32.totalorder %s50, 1
    %s54 = scalar_select %p53, %s50, 1
    %s55 = smul.addr %s54, 8
    %s56 = scalar_lea.vmem %s0, %s55
    %s57 = sadd.s32 0, 0
    %s58 = smul.u32 16, %s57
    %s59 = ssub.s32 2, %s58
    %s60 = smul.u32 128, %s59
    %s61 = sadd.s32 0, 0
    %p62 = scmp.lt.s32.totalorder %s61, 0
    %s63 = scalar_select %p62, %s61, 0
    %s64 = scalar_lea.vmem %s3, %s63
    %s65 = sadd.s32 0, 0
    %p66 = scmp.eq.s32.totalorder 0, 0
    // Predicated region
    $region18: #{weight_and_sum.1} parent=1 // pred_check
      %p67 = pneg %p66
    $region19: #{weight_and_sum.1} parent=1 // pred_check_branch
      %69 = sbr.rel (%p67) target = $region21
    $region20: #{weight_and_sum.1} parent=1 // pred_region
      %vm70 = vcmask 254976
      %71 = vst.msk [vmem:[#allocation3] sm:$0x3] %vm70, 0.0
    $region21: #{weight_and_sum.1} parent=1 // pred_fallthru
      _
    %v72 = vld [vmem:[%s56] sm:$0xff]
    %v73 = vld [vmem:[%s56 + $0x8] sm:$0xff]
    %v74 = vld [vmem:[%s56 + $0x10] sm:$0xff]
    %v75 = vld [vmem:[%s56 + $0x18] sm:$0xff]
    %v76 = vld [vmem:[%s56 + $0x20] sm:$0xff]
    %v77 = vld [vmem:[%s56 + $0x28] sm:$0xff]
    %v78 = vld [vmem:[%s56 + $0x30] sm:$0xff]
    %v79 = vld [vmem:[%s56 + $0x38] sm:$0xff]
    %v80 = vld [vmem:[%s56 + $0x40] sm:$0xff]
    %v81 = vld [vmem:[%s56 + $0x48] sm:$0xff]
    %v82 = vld [vmem:[%s56 + $0x50] sm:$0xff]
    %v83 = vld [vmem:[%s56 + $0x58] sm:$0xff]
    %v84 = vld [vmem:[%s56 + $0x60] sm:$0xff]
    %v85 = vld [vmem:[%s56 + $0x68] sm:$0xff]
    %v86 = vld [vmem:[%s56 + $0x70] sm:$0xff]
    %v87 = vld [vmem:[%s56 + $0x78] sm:$0xff]
    %v88 = vld [vmem:[%s1] sm:$0xff]
    %v89 = vld [vmem:[%s1 + $0x8] sm:$0xff]
    %v90 = vld [vmem:[%s1 + $0x10] sm:$0xff]
    %v91 = vld [vmem:[%s1 + $0x18] sm:$0xff]
    %v92 = vld [vmem:[#allocation2] sm:$0x1]
    %s93 = vtos %v92
    %v94 = vstv %s93
    %vm95 = vcmask 261120
    %v97 = vsel %vm95, %v72, 0
    %v100 = vsel %vm95, %v73, 0
    %v103 = vsel %vm95, %v74, 0
    %v106 = vsel %vm95, %v75, 0
    %v109 = vsel %vm95, %v76, 0
    %v112 = vsel %vm95, %v77, 0
    %v115 = vsel %vm95, %v78, 0
    %v118 = vsel %vm95, %v79, 0
    %v121 = vsel %vm95, %v80, 0
    %v124 = vsel %vm95, %v81, 0
    %v127 = vsel %vm95, %v82, 0
    %v130 = vsel %vm95, %v83, 0
    %v133 = vsel %vm95, %v84, 0
    %v136 = vsel %vm95, %v85, 0
    %v139 = vsel %vm95, %v86, 0
    %v142 = vsel %vm95, %v87, 0
    %144 = vmatprep.subr.mxu0 0.0
    %145 = vmatpush1.msra.mxu0 0.0
    %146 = vmatprep.subr.mxu0 0.0
    %147 = vmatpush1.msra.mxu0 0.0
    %148 = vmatprep.subr.mxu0 0.0
    %149 = vmatpush1.msra.mxu0 0.0
    %150 = vmatprep.subr.mxu0 0.0
    %151 = vmatpush1.msra.mxu0 0.0
    %152 = vmatprep.subr.mxu0 0.0
    %153 = vmatpush1.msra.mxu0 0.0
    %154 = vmatprep.subr.mxu0 0.0
    %155 = vmatpush1.msra.mxu0 0.0
    %156 = vmatprep.subr.mxu0 0.0
    %157 = vmatpush1.msra.mxu0 0.0
    %158 = vmatprep.subr.mxu0 0.0
    %159 = vmatpush1.msra.mxu0 0.0
    %160 = vmatprep.subr.mxu0 0.0
    %161 = vmatpush1.msra.mxu0 0.0
    %162 = vmatprep.subr.mxu0 0.0
    %163 = vmatpush1.msra.mxu0 0.0
    %164 = vmatprep.subr.mxu0 0.0
    %165 = vmatpush1.msra.mxu0 0.0
    %166 = vmatprep.subr.mxu0 0.0
    %167 = vmatpush1.msra.mxu0 0.0
    %168 = vmatprep.subr.mxu0 0.0
    %169 = vmatpush1.msra.mxu0 %v91
    %170 = vmatprep.subr.mxu0 0.0
    %171 = vmatpush1.msra.mxu0 %v90
    %172 = vmatprep.subr.mxu0 0.0
    %173 = vmatpush1.msra.mxu0 %v89
    %174 = vmatprep.subr.mxu0 0.0
    %175 = vmatpush1.msra.mxu0 %v88
    %176 = vmatprep.subr.mxu0 0.0
    %177 = vmatpush2.msra.mxu0 0.0
    %178 = vmatprep.subr.mxu0 0.0
    %179 = vmatpush2.msra.mxu0 0.0
    %180 = vmatprep.subr.mxu0 0.0
    %181 = vmatpush2.msra.mxu0 0.0
    %182 = vmatprep.subr.mxu0 0.0
    %183 = vmatpush2.msra.mxu0 0.0
    %184 = vmatprep.subr.mxu0 0.0
    %185 = vmatpush2.msra.mxu0 0.0
    %186 = vmatprep.subr.mxu0 0.0
    %187 = vmatpush2.msra.mxu0 0.0
    %188 = vmatprep.subr.mxu0 0.0
    %189 = vmatpush2.msra.mxu0 0.0
    %190 = vmatprep.subr.mxu0 0.0
    %191 = vmatpush2.msra.mxu0 0.0
    %192 = vmatprep.subr.mxu0 0.0
    %193 = vmatpush2.msra.mxu0 0.0
    %194 = vmatprep.subr.mxu0 0.0
    %195 = vmatpush2.msra.mxu0 0.0
    %196 = vmatprep.subr.mxu0 0.0
    %197 = vmatpush2.msra.mxu0 0.0
    %198 = vmatprep.subr.mxu0 0.0
    %199 = vmatpush2.msra.mxu0 0.0
    %200 = vmatprep.subr.mxu0 0.0
    %201 = vmatpush2.msra.mxu0 0.0
    %202 = vmatprep.subr.mxu0 0.0
    %203 = vmatpush2.msra.mxu0 0.0
    %204 = vmatprep.subr.mxu0 0.0
    %205 = vmatpush2.msra.mxu0 0.0
    %206 = vmatprep.subr.mxu0 0.0
    %207 = vmatpush2.msra.mxu0 0.0
    %208 = vmatprep.mubr.f32.mxu0 0.0
    %209 = vmatmul.mubr.f32.gmra.mxu0 %v97
    %v210 = vpop.f32.mrf.mxu0
    %v211 = vadd.f32 %v94, %v210
    %v212 = vpop.f32.mrf.mxu0
    %213 = vmatprep.mubr.f32.mxu0 0.0
    %214 = vmatmul.mubr.f32.gmra.mxu0 %v100
    %v215 = vpop.f32.mrf.mxu0
    %v216 = vadd.f32 %v94, %v215
    %v217 = vpop.f32.mrf.mxu0
    %218 = vmatprep.mubr.f32.mxu0 0.0
    %219 = vmatmul.mubr.f32.gmra.mxu0 %v103
    %v220 = vpop.f32.mrf.mxu0
    %v221 = vadd.f32 %v94, %v220
    %v222 = vpop.f32.mrf.mxu0
    %223 = vmatprep.mubr.f32.mxu0 0.0
    %224 = vmatmul.mubr.f32.gmra.mxu0 %v106
    %v225 = vpop.f32.mrf.mxu0
    %v226 = vadd.f32 %v94, %v225
    %v227 = vpop.f32.mrf.mxu0
    %228 = vmatprep.mubr.f32.mxu0 0.0
    %229 = vmatmul.mubr.f32.gmra.mxu0 %v109
    %v230 = vpop.f32.mrf.mxu0
    %v231 = vadd.f32 %v94, %v230
    %v232 = vpop.f32.mrf.mxu0
    %233 = vmatprep.mubr.f32.mxu0 0.0
    %234 = vmatmul.mubr.f32.gmra.mxu0 %v112
    %v235 = vpop.f32.mrf.mxu0
    %v236 = vadd.f32 %v94, %v235
    %v237 = vpop.f32.mrf.mxu0
    %238 = vmatprep.mubr.f32.mxu0 0.0
    %239 = vmatmul.mubr.f32.gmra.mxu0 %v115
    %v240 = vpop.f32.mrf.mxu0
    %v241 = vadd.f32 %v94, %v240
    %v242 = vpop.f32.mrf.mxu0
    %243 = vmatprep.mubr.f32.mxu0 0.0
    %244 = vmatmul.mubr.f32.gmra.mxu0 %v118
    %v245 = vpop.f32.mrf.mxu0
    %v246 = vadd.f32 %v94, %v245
    %v247 = vpop.f32.mrf.mxu0
    %248 = vmatprep.mubr.f32.mxu0 0.0
    %249 = vmatmul.mubr.f32.gmra.mxu0 %v121
    %v250 = vpop.f32.mrf.mxu0
    %v251 = vadd.f32 %v94, %v250
    %v252 = vpop.f32.mrf.mxu0
    %253 = vmatprep.mubr.f32.mxu0 0.0
    %254 = vmatmul.mubr.f32.gmra.mxu0 %v124
    %v255 = vpop.f32.mrf.mxu0
    %v256 = vadd.f32 %v94, %v255
    %v257 = vpop.f32.mrf.mxu0
    %258 = vmatprep.mubr.f32.mxu0 0.0
    %259 = vmatmul.mubr.f32.gmra.mxu0 %v127
    %v260 = vpop.f32.mrf.mxu0
    %v261 = vadd.f32 %v94, %v260
    %v262 = vpop.f32.mrf.mxu0
    %263 = vmatprep.mubr.f32.mxu0 0.0
    %264 = vmatmul.mubr.f32.gmra.mxu0 %v130
    %v265 = vpop.f32.mrf.mxu0
    %v266 = vadd.f32 %v94, %v265
    %v267 = vpop.f32.mrf.mxu0
    %268 = vmatprep.mubr.f32.mxu0 0.0
    %269 = vmatmul.mubr.f32.gmra.mxu0 %v133
    %v270 = vpop.f32.mrf.mxu0
    %v271 = vadd.f32 %v94, %v270
    %v272 = vpop.f32.mrf.mxu0
    %273 = vmatprep.mubr.f32.mxu0 0.0
    %274 = vmatmul.mubr.f32.gmra.mxu0 %v136
    %v275 = vpop.f32.mrf.mxu0
    %v276 = vadd.f32 %v94, %v275
    %v277 = vpop.f32.mrf.mxu0
    %278 = vmatprep.mubr.f32.mxu0 0.0
    %279 = vmatmul.mubr.f32.gmra.mxu0 %v139
    %v280 = vpop.f32.mrf.mxu0
    %v281 = vadd.f32 %v94, %v280
    %v282 = vpop.f32.mrf.mxu0
    %283 = vmatprep.mubr.f32.mxu0 0.0
    %284 = vmatmul.mubr.f32.gmra.mxu0 %v142
    %v285 = vpop.f32.mrf.mxu0
    %v286 = vadd.f32 %v94, %v285
    %v287 = vpop.f32.mrf.mxu0
    %288 = vdwg.mxu0
    %v289 = vxor.u32 %v211, 2147483648
    %v290 = vxor.u32 %v216, 2147483648
    %v291 = vxor.u32 %v221, 2147483648
    %v292 = vxor.u32 %v226, 2147483648
    %v293 = vxor.u32 %v231, 2147483648
    %v294 = vxor.u32 %v236, 2147483648
    %v295 = vxor.u32 %v241, 2147483648
    %v296 = vxor.u32 %v246, 2147483648
    %v297 = vxor.u32 %v251, 2147483648
    %v298 = vxor.u32 %v256, 2147483648
    %v299 = vxor.u32 %v261, 2147483648
    %v300 = vxor.u32 %v266, 2147483648
    %v301 = vxor.u32 %v271, 2147483648
    %v302 = vxor.u32 %v276, 2147483648
    %v303 = vxor.u32 %v281, 2147483648
    %v304 = vxor.u32 %v286, 2147483648
    %v305 = vmul.f32 %v289, 1.442695
    %v306 = vpow.pop %v305
    %v307 = vmul.f32 %v290, 1.442695
    %v308 = vpow.pop %v307
    %v309 = vmul.f32 %v291, 1.442695
    %v310 = vpow.pop %v309
    %v311 = vmul.f32 %v292, 1.442695
    %v312 = vpow.pop %v311
    %v313 = vmul.f32 %v293, 1.442695
    %v314 = vpow.pop %v313
    %v315 = vmul.f32 %v294, 1.442695
    %v316 = vpow.pop %v315
    %v317 = vmul.f32 %v295, 1.442695
    %v318 = vpow.pop %v317
    %v319 = vmul.f32 %v296, 1.442695
    %v320 = vpow.pop %v319
    %v321 = vmul.f32 %v297, 1.442695
    %v322 = vpow.pop %v321
    %v323 = vmul.f32 %v298, 1.442695
    %v324 = vpow.pop %v323
    %v325 = vmul.f32 %v299, 1.442695
    %v326 = vpow.pop %v325
    %v327 = vmul.f32 %v300, 1.442695
    %v328 = vpow.pop %v327
    %v329 = vmul.f32 %v301, 1.442695
    %v330 = vpow.pop %v329
    %v331 = vmul.f32 %v302, 1.442695
    %v332 = vpow.pop %v331
    %v333 = vmul.f32 %v303, 1.442695
    %v334 = vpow.pop %v333
    %v335 = vmul.f32 %v304, 1.442695
    %v336 = vpow.pop %v335
    %v337 = vadd.f32 %v306, 1.0
    %v338 = vadd.f32 %v308, 1.0
    %v339 = vadd.f32 %v310, 1.0
    %v340 = vadd.f32 %v312, 1.0
    %v341 = vadd.f32 %v314, 1.0
    %v342 = vadd.f32 %v316, 1.0
    %v343 = vadd.f32 %v318, 1.0
    %v344 = vadd.f32 %v320, 1.0
    %v345 = vadd.f32 %v322, 1.0
    %v346 = vadd.f32 %v324, 1.0
    %v347 = vadd.f32 %v326, 1.0
    %v348 = vadd.f32 %v328, 1.0
    %v349 = vadd.f32 %v330, 1.0
    %v350 = vadd.f32 %v332, 1.0
    %v351 = vadd.f32 %v334, 1.0
    %v352 = vadd.f32 %v336, 1.0
    %v353 = vrcp.pop %v337
    %v354 = vmul.f32 1.0, %v353
    %v355 = vrcp.pop %v338
    %v356 = vmul.f32 1.0, %v355
    %v357 = vrcp.pop %v339
    %v358 = vmul.f32 1.0, %v357
    %v359 = vrcp.pop %v340
    %v360 = vmul.f32 1.0, %v359
    %v361 = vrcp.pop %v341
    %v362 = vmul.f32 1.0, %v361
    %v363 = vrcp.pop %v342
    %v364 = vmul.f32 1.0, %v363
    %v365 = vrcp.pop %v343
    %v366 = vmul.f32 1.0, %v365
    %v367 = vrcp.pop %v344
    %v368 = vmul.f32 1.0, %v367
    %v369 = vrcp.pop %v345
    %v370 = vmul.f32 1.0, %v369
    %v371 = vrcp.pop %v346
    %v372 = vmul.f32 1.0, %v371
    %v373 = vrcp.pop %v347
    %v374 = vmul.f32 1.0, %v373
    %v375 = vrcp.pop %v348
    %v376 = vmul.f32 1.0, %v375
    %v377 = vrcp.pop %v349
    %v378 = vmul.f32 1.0, %v377
    %v379 = vrcp.pop %v350
    %v380 = vmul.f32 1.0, %v379
    %v381 = vrcp.pop %v351
    %v382 = vmul.f32 1.0, %v381
    %v383 = vrcp.pop %v352
    %v384 = vmul.f32 1.0, %v383
    %386 = vset.pattern.permute.xlu0 0
    %387 = vperm.xlu0 %386, %v354
    %v388 = vpop.permute.xlu0 %387
    %391 = vset.pattern.permute.xlu0 0
    %392 = vperm.xlu0 %391, %v356
    %v393 = vpop.permute.xlu0 %392
    %396 = vset.pattern.permute.xlu0 0
    %397 = vperm.xlu0 %396, %v358
    %v398 = vpop.permute.xlu0 %397
    %401 = vset.pattern.permute.xlu0 0
    %402 = vperm.xlu0 %401, %v360
    %v403 = vpop.permute.xlu0 %402
    %406 = vset.pattern.permute.xlu0 0
    %407 = vperm.xlu0 %406, %v362
    %v408 = vpop.permute.xlu0 %407
    %411 = vset.pattern.permute.xlu0 0
    %412 = vperm.xlu0 %411, %v364
    %v413 = vpop.permute.xlu0 %412
    %416 = vset.pattern.permute.xlu0 0
    %417 = vperm.xlu0 %416, %v366
    %v418 = vpop.permute.xlu0 %417
    %421 = vset.pattern.permute.xlu0 0
    %422 = vperm.xlu0 %421, %v368
    %v423 = vpop.permute.xlu0 %422
    %426 = vset.pattern.permute.xlu0 0
    %427 = vperm.xlu0 %426, %v370
    %v428 = vpop.permute.xlu0 %427
    %431 = vset.pattern.permute.xlu0 0
    %432 = vperm.xlu0 %431, %v372
    %v433 = vpop.permute.xlu0 %432
    %436 = vset.pattern.permute.xlu0 0
    %437 = vperm.xlu0 %436, %v374
    %v438 = vpop.permute.xlu0 %437
    %441 = vset.pattern.permute.xlu0 0
    %442 = vperm.xlu0 %441, %v376
    %v443 = vpop.permute.xlu0 %442
    %446 = vset.pattern.permute.xlu0 0
    %447 = vperm.xlu0 %446, %v378
    %v448 = vpop.permute.xlu0 %447
    %451 = vset.pattern.permute.xlu0 0
    %452 = vperm.xlu0 %451, %v380
    %v453 = vpop.permute.xlu0 %452
    %456 = vset.pattern.permute.xlu0 0
    %457 = vperm.xlu0 %456, %v382
    %v458 = vpop.permute.xlu0 %457
    %461 = vset.pattern.permute.xlu0 0
    %462 = vperm.xlu0 %461, %v384
    %v463 = vpop.permute.xlu0 %462
    %v465 = vmul.f32 %v72, %v388
    %v466 = vmul.f32 %v73, %v393
    %v467 = vmul.f32 %v74, %v398
    %v468 = vmul.f32 %v75, %v403
    %v469 = vmul.f32 %v76, %v408
    %v470 = vmul.f32 %v77, %v413
    %v471 = vmul.f32 %v78, %v418
    %v472 = vmul.f32 %v79, %v423
    %v473 = vmul.f32 %v80, %v428
    %v474 = vmul.f32 %v81, %v433
    %v475 = vmul.f32 %v82, %v438
    %v476 = vmul.f32 %v83, %v443
    %v477 = vmul.f32 %v84, %v448
    %v478 = vmul.f32 %v85, %v453
    %v479 = vmul.f32 %v86, %v458
    %v480 = vmul.f32 %v87, %v463
    %s481 = sadd.s32 0, 0
    %v482 = vlaneseq
    %v483 = vshrl.u32 %v482, 7
    %v484 = vadd.s32 %v483, 8
    %v485 = vadd.s32 %v483, 16
    %v486 = vadd.s32 %v483, 24
    %v487 = vadd.s32 %v483, 32
    %v488 = vadd.s32 %v483, 40
    %v489 = vadd.s32 %v483, 48
    %v490 = vadd.s32 %v483, 56
    %v491 = vadd.s32 %v483, 64
    %v492 = vadd.s32 %v483, 72
    %v493 = vadd.s32 %v483, 80
    %v494 = vadd.s32 %v483, 88
    %v495 = vadd.s32 %v483, 96
    %v496 = vadd.s32 %v483, 104
    %v497 = vadd.s32 %v483, 112
    %v498 = vadd.s32 %v483, 120
    %s499 = smul.u32 %s481, 128
    %v500 = vstv %s499
    %v501 = vadd.s32 %v483, %v500
    %v502 = vadd.s32 %v484, %v500
    %v503 = vadd.s32 %v485, %v500
    %v504 = vadd.s32 %v486, %v500
    %v505 = vadd.s32 %v487, %v500
    %v506 = vadd.s32 %v488, %v500
    %v507 = vadd.s32 %v489, %v500
    %v508 = vadd.s32 %v490, %v500
    %v509 = vadd.s32 %v491, %v500
    %v510 = vadd.s32 %v492, %v500
    %v511 = vadd.s32 %v493, %v500
    %v512 = vadd.s32 %v494, %v500
    %v513 = vadd.s32 %v495, %v500
    %v514 = vadd.s32 %v496, %v500
    %v515 = vadd.s32 %v497, %v500
    %v516 = vadd.s32 %v498, %v500
    %vm517 = vcmp.lt.s32.totalorder %v501, 16
    %vm518 = vcmp.lt.s32.totalorder %v502, 16
    %vm519 = vcmp.lt.s32.totalorder %v503, 16
    %vm520 = vcmp.lt.s32.totalorder %v504, 16
    %vm521 = vcmp.lt.s32.totalorder %v505, 16
    %vm522 = vcmp.lt.s32.totalorder %v506, 16
    %vm523 = vcmp.lt.s32.totalorder %v507, 16
    %vm524 = vcmp.lt.s32.totalorder %v508, 16
    %vm525 = vcmp.lt.s32.totalorder %v509, 16
    %vm526 = vcmp.lt.s32.totalorder %v510, 16
    %vm527 = vcmp.lt.s32.totalorder %v511, 16
    %vm528 = vcmp.lt.s32.totalorder %v512, 16
    %vm529 = vcmp.lt.s32.totalorder %v513, 16
    %vm530 = vcmp.lt.s32.totalorder %v514, 16
    %vm531 = vcmp.lt.s32.totalorder %v515, 16
    %vm532 = vcmp.lt.s32.totalorder %v516, 16
    %v533 = vsel %vm517, 1, 0
    %v534 = vsel %vm518, 1, 0
    %v535 = vsel %vm519, 1, 0
    %v536 = vsel %vm520, 1, 0
    %v537 = vsel %vm521, 1, 0
    %v538 = vsel %vm522, 1, 0
    %v539 = vsel %vm523, 1, 0
    %v540 = vsel %vm524, 1, 0
    %v541 = vsel %vm525, 1, 0
    %v542 = vsel %vm526, 1, 0
    %v543 = vsel %vm527, 1, 0
    %v544 = vsel %vm528, 1, 0
    %v545 = vsel %vm529, 1, 0
    %v546 = vsel %vm530, 1, 0
    %v547 = vsel %vm531, 1, 0
    %v548 = vsel %vm532, 1, 0
    %vm549 = vcmp.eq.s32.totalorder %v533, 1
    %vm550 = vcmp.eq.s32.totalorder %v534, 1
    %vm551 = vcmp.eq.s32.totalorder %v535, 1
    %vm552 = vcmp.eq.s32.totalorder %v536, 1
    %vm553 = vcmp.eq.s32.totalorder %v537, 1
    %vm554 = vcmp.eq.s32.totalorder %v538, 1
    %vm555 = vcmp.eq.s32.totalorder %v539, 1
    %vm556 = vcmp.eq.s32.totalorder %v540, 1
    %vm557 = vcmp.eq.s32.totalorder %v541, 1
    %vm558 = vcmp.eq.s32.totalorder %v542, 1
    %vm559 = vcmp.eq.s32.totalorder %v543, 1
    %vm560 = vcmp.eq.s32.totalorder %v544, 1
    %vm561 = vcmp.eq.s32.totalorder %v545, 1
    %vm562 = vcmp.eq.s32.totalorder %v546, 1
    %vm563 = vcmp.eq.s32.totalorder %v547, 1
    %vm564 = vcmp.eq.s32.totalorder %v548, 1
    %v565 = vsel %vm549, %v465, 0.0
    %v566 = vsel %vm550, %v466, 0.0
    %v567 = vsel %vm551, %v467, 0.0
    %v568 = vsel %vm552, %v468, 0.0
    %v569 = vsel %vm553, %v469, 0.0
    %v570 = vsel %vm554, %v470, 0.0
    %v571 = vsel %vm555, %v471, 0.0
    %v572 = vsel %vm556, %v472, 0.0
    %v573 = vsel %vm557, %v473, 0.0
    %v574 = vsel %vm558, %v474, 0.0
    %v575 = vsel %vm559, %v475, 0.0
    %v576 = vsel %vm560, %v476, 0.0
    %v577 = vsel %vm561, %v477, 0.0
    %v578 = vsel %vm562, %v478, 0.0
    %v579 = vsel %vm563, %v479, 0.0
    %v580 = vsel %vm564, %v480, 0.0
    %v581 = vld [vmem:[%s64] sm:$0x1]
    %v582 = vlaneseq
    %v583 = vshrl.u32 %v582, 7
    %v584 = vsub.s32 0, %v583
    %v585 = vrot.slane %v581, %v584
    %vm586 = vcmp.eq.s32.totalorder %v483, %v585
    %v587 = vsel %vm586, 1, 0
    %v588 = vcvt.s32.f32 %v587
    %v589 = vld [vmem:[#allocation3] sm:$0x3]
    %590 = vmatprep.subr.mxu0 0.0
    %591 = vmatpush1.msra.mxu0 %v580
    %592 = vmatprep.subr.mxu0 0.0
    %593 = vmatpush1.msra.mxu0 %v579
    %594 = vmatprep.subr.mxu0 0.0
    %595 = vmatpush1.msra.mxu0 %v578
    %596 = vmatprep.subr.mxu0 0.0
    %597 = vmatpush1.msra.mxu0 %v577
    %598 = vmatprep.subr.mxu0 0.0
    %599 = vmatpush1.msra.mxu0 %v576
    %600 = vmatprep.subr.mxu0 0.0
    %601 = vmatpush1.msra.mxu0 %v575
    %602 = vmatprep.subr.mxu0 0.0
    %603 = vmatpush1.msra.mxu0 %v574
    %604 = vmatprep.subr.mxu0 0.0
    %605 = vmatpush1.msra.mxu0 %v573
    %606 = vmatprep.subr.mxu0 0.0
    %607 = vmatpush1.msra.mxu0 %v572
    %608 = vmatprep.subr.mxu0 0.0
    %609 = vmatpush1.msra.mxu0 %v571
    %610 = vmatprep.subr.mxu0 0.0
    %611 = vmatpush1.msra.mxu0 %v570
    %612 = vmatprep.subr.mxu0 0.0
    %613 = vmatpush1.msra.mxu0 %v569
    %614 = vmatprep.subr.mxu0 0.0
    %615 = vmatpush1.msra.mxu0 %v568
    %616 = vmatprep.subr.mxu0 0.0
    %617 = vmatpush1.msra.mxu0 %v567
    %618 = vmatprep.subr.mxu0 0.0
    %619 = vmatpush1.msra.mxu0 %v566
    %620 = vmatprep.subr.mxu0 0.0
    %621 = vmatpush1.msra.mxu0 %v565
    %622 = vmatprep.subr.mxu0 0.0
    %623 = vmatpush2.msra.mxu0 0.0
    %624 = vmatprep.subr.mxu0 0.0
    %625 = vmatpush2.msra.mxu0 0.0
    %626 = vmatprep.subr.mxu0 0.0
    %627 = vmatpush2.msra.mxu0 0.0
    %628 = vmatprep.subr.mxu0 0.0
    %629 = vmatpush2.msra.mxu0 0.0
    %630 = vmatprep.subr.mxu0 0.0
    %631 = vmatpush2.msra.mxu0 0.0
    %632 = vmatprep.subr.mxu0 0.0
    %633 = vmatpush2.msra.mxu0 0.0
    %634 = vmatprep.subr.mxu0 0.0
    %635 = vmatpush2.msra.mxu0 0.0
    %636 = vmatprep.subr.mxu0 0.0
    %637 = vmatpush2.msra.mxu0 0.0
    %638 = vmatprep.subr.mxu0 0.0
    %639 = vmatpush2.msra.mxu0 0.0
    %640 = vmatprep.subr.mxu0 0.0
    %641 = vmatpush2.msra.mxu0 0.0
    %642 = vmatprep.subr.mxu0 0.0
    %643 = vmatpush2.msra.mxu0 0.0
    %644 = vmatprep.subr.mxu0 0.0
    %645 = vmatpush2.msra.mxu0 0.0
    %646 = vmatprep.subr.mxu0 0.0
    %647 = vmatpush2.msra.mxu0 0.0
    %648 = vmatprep.subr.mxu0 0.0
    %649 = vmatpush2.msra.mxu0 0.0
    %650 = vmatprep.subr.mxu0 0.0
    %651 = vmatpush2.msra.mxu0 0.0
    %652 = vmatprep.subr.mxu0 0.0
    %653 = vmatpush2.msra.mxu0 0.0
    %654 = vmatprep.mubr.f32.mxu0 0.0
    %655 = vmatmul.mubr.f32.gmra.mxu0 %v588
    %v656 = vpop.f32.mrf.mxu0
    %v657 = vadd.f32 0.0, %v656
    %v658 = vpop.f32.mrf.mxu0
    %659 = vdwg.mxu0
    %v660 = vadd.f32 %v589, %v657
    %vm661 = vcmask 254976
    %662 = vst.msk [vmem:[#allocation3] sm:$0x3] %vm661, %v660
    // Predicated region
    $region22: #{weight_and_sum.1} parent=1 // pred_check
      _
    $region23: #{weight_and_sum.1} parent=1 // pred_check_branch
      %664 = sbr.rel (0) target = $region25
    $region24: #{weight_and_sum.1} parent=1 // pred_region
      %s666 = ssub.s32 32, 32
      %667 = vsyncadd [#allocation4], %s666
      %s669 = sshll.u32 [#allocation3], 4
      %s670 = int_to_ptr.vmem [resolvable:$true] %s669
      %672 = dma.vmem_to_hbm [thread:$0]  %s670, 32, %s4, [#allocation4]
    $region25: #{weight_and_sum.1} parent=1 // pred_fallthru
      _
    // Predicated region
    $region26: #{weight_and_sum.1} parent=1 // pred_check
      _
    $region27: #{weight_and_sum.1} parent=1 // pred_check_branch
      %674 = sbr.rel (0) target = $region29
    $region28: #{weight_and_sum.1} parent=1 // pred_region
      %675 = dma.done [#allocation4], 32
    $region29: #{weight_and_sum.1} parent=1 // pred_fallthru
      _
    %676 = vsyncpa [#allocation4], 1

</llo_original>
